<compile_context>
chip_gen: v7x
topology: tpu7x:2x2x1
jax: 0.10.0
libtpu: 0.0.40
codegen_flags: <defaults>
</compile_context>

<pallas_src>
import functools

import jax
import jax.numpy as jnp
from jax import lax
from jax.experimental import pallas as pl
from jax.experimental.pallas import tpu as pltpu

LANES = 128
SUBLANES = 8
CHUNK_ROWS = 32          # strip-mine granularity (rows of 128 lanes)
MAX_BLOCK_ROWS = 2048    # 2048*128*4B = 1 MiB per f32 input block


def _round_up(x, m):
    return ((x + m - 1) // m) * m


def _combined_loss_kernel(pred_ref, true_ref, out_ref, *,
                          block_rows, chunk, full_rows, rem_lanes,
                          full_blocks, tiles_per_core, gamma, needs_mask):
    """Accumulates per-core partial sums [inter, union, focal] into out_ref.

    out_ref: VMEM f32[3, 8, 128], resident across the arbitrary grid axis.
    """
    c = pl.program_id(0)          # core slice (parallel axis)
    i = pl.program_id(1)          # block within this core's slice (arbitrary)
    n_chunks = block_rows // chunk

    @pl.when(i == 0)
    def _init():
        out_ref[...] = jnp.zeros_like(out_ref)

    global_block = c * tiles_per_core + i   # unclamped logical block index

    def reduce8(x):
        # (chunk, 128) -> (8, 128) via static-sliced VPU adds (no XLU).
        r = x[0:SUBLANES, :]
        for s in range(SUBLANES, chunk, SUBLANES):
            r = r + x[s:s + SUBLANES, :]
        return r

    def run(masked):
        if masked:
            row_ids = lax.broadcasted_iota(jnp.int32, (chunk, LANES), 0)
            lane_ids = lax.broadcasted_iota(jnp.int32, (chunk, LANES), 1)
            block_base = global_block * block_rows

        def body(j, carry):
            acc_inter, acc_union, acc_focal = carry
            off = pl.multiple_of(j * chunk, chunk)
            p = pred_ref[pl.ds(off, chunk), :].astype(jnp.float32)
            t = true_ref[pl.ds(off, chunk), :].astype(jnp.float32)
            if masked:
                grow = block_base + off + row_ids
                valid = grow < full_rows
                if rem_lanes > 0:
                    valid = valid | ((grow == full_rows)
                                     & (lane_ids < rem_lanes))
                # Zero inputs BEFORE any transcendental (NaN-safe for garbage
                # data in padded / clamped regions).
                p = jnp.where(valid, p, 0.0)
                t = jnp.where(valid, t, 0.0)
            prod = p * t
            # Numerically-stable BCE-with-logits:
            #   max(x,0) - x*y + log1p(exp(-|x|))
            bce = jnp.maximum(p, 0.0) - prod + jnp.log1p(jnp.exp(-jnp.abs(p)))
            pt = jnp.exp(-bce)
            omp = 1.0 - pt
            if gamma == 2.0:
                mod = omp * omp          # explicit square: no pow
            elif gamma == 1.0:
                mod = omp
            else:
                mod = omp ** gamma
            focal = mod * bce
            if masked:
                focal = jnp.where(valid, focal, 0.0)   # bce(0,0) != 0
            return (acc_inter + reduce8(prod),
                    acc_union + reduce8(p + t),
                    acc_focal + reduce8(focal))

        zero = jnp.zeros((SUBLANES, LANES), jnp.float32)
        acc_inter, acc_union, acc_focal = lax.fori_loop(
            0, n_chunks, body, (zero, zero, zero),
            unroll=min(n_chunks, 8))
        out_ref[0] += acc_inter
        out_ref[1] += acc_union
        out_ref[2] += acc_focal

    if needs_mask:
        @pl.when(global_block < full_blocks)
        def _bulk():
            run(False)

        @pl.when(global_block >= full_blocks)
        def _edge():
            run(True)
    else:
        run(False)


def combined_loss_pallas(y_pred, y_true, dice_weight=0.5, focal_weight=0.5,
                         gamma=2.0):
    """CombinedLoss.forward(y_pred, y_true) -> scalar f32.

    Note: dice uses raw logits (no sigmoid), exactly as in the PyTorch module.
    """
    assert y_pred.shape == y_true.shape
    total = int(y_pred.size)
    gamma = float(gamma)

    flat_p = y_pred.reshape(-1)
    flat_t = y_true.reshape(-1)

    rows_p = pl.cdiv(total, LANES)
    rem = total % LANES
    if rem != 0:
        # TODO(synk): this pad is one extra HBM pass for non-multiple-of-128
        # sizes; a manual-DMA 1-D path would avoid it.
        pad = rows_p * LANES - total
        flat_p = jnp.pad(flat_p, (0, pad))
        flat_t = jnp.pad(flat_t, (0, pad))
    p2d = flat_p.reshape(rows_p, LANES)
    t2d = flat_t.reshape(rows_p, LANES)

    block_rows = min(MAX_BLOCK_ROWS, _round_up(rows_p, CHUNK_ROWS))
    num_tiles = pl.cdiv(rows_p, block_rows)
    num_cores = 2 if num_tiles >= 2 else 1        # 2-way split for v7x
    tiles_per_core = pl.cdiv(num_tiles, num_cores)
    full_blocks = total // (block_rows * LANES)   # blocks with no invalid elems
    needs_mask = (num_cores * tiles_per_core * block_rows * LANES) != total
    max_block = num_tiles - 1

    def in_map(c, i):
        # Clamp so overshoot blocks (odd split / edge) stay in-bounds; their
        # contribution is masked to zero inside the kernel.
        return (jnp.minimum(c * tiles_per_core + i, max_block), 0)

    kernel = functools.partial(
        _combined_loss_kernel,
        block_rows=block_rows,
        chunk=CHUNK_ROWS,
        full_rows=total // LANES,
        rem_lanes=rem,
        full_blocks=full_blocks,
        tiles_per_core=tiles_per_core,
        gamma=gamma,
        needs_mask=needs_mask,
    )

    itemsize = y_pred.dtype.itemsize
    out = pl.pallas_call(
        kernel,
        out_shape=jax.ShapeDtypeStruct((num_cores, 3, SUBLANES, LANES),
                                       jnp.float32),
        grid_spec=pltpu.PrefetchScalarGridSpec(
            num_scalar_prefetch=0,
            grid=(num_cores, tiles_per_core),
            in_specs=[
                pl.BlockSpec((block_rows, LANES), in_map),
                pl.BlockSpec((block_rows, LANES), in_map),
            ],
            out_specs=pl.BlockSpec((None, 3, SUBLANES, LANES),
                                   lambda c, i: (c, 0, 0, 0)),
        ),
        compiler_params=pltpu.CompilerParams(
            dimension_semantics=("parallel", "arbitrary")),
        cost_estimate=pl.CostEstimate(
            flops=20 * total,
            transcendentals=3 * total,
            bytes_accessed=2 * total * itemsize
                           + num_cores * 3 * SUBLANES * LANES * 4),
    )(p2d, t2d)

    sums = jnp.sum(out, axis=(0, 2, 3))           # [inter, union, focal_sum]
    inter, union, focal_sum = sums[0], sums[1], sums[2]
    smooth = 1.0
    dice = (2.0 * inter + smooth) / (union + smooth)
    dice_loss_val = 1.0 - dice
    focal_mean = focal_sum / jnp.float32(total)
    return dice_weight * dice_loss_val + focal_weight * focal_mean


def combined_loss_ref(y_pred, y_true, dice_weight=0.5, focal_weight=0.5,
                      gamma=2.0):
    """Pure-JAX reference mirroring the PyTorch module."""
    p = y_pred.astype(jnp.float32)
    t = y_true.astype(jnp.float32)
    smooth = 1.0
    inter = jnp.sum(p * t)
    union = jnp.sum(p) + jnp.sum(t)
    dice = (2.0 * inter + smooth) / (union + smooth)
    dice_l = 1.0 - dice
    bce = jnp.maximum(p, 0.0) - p * t + jnp.log1p(jnp.exp(-jnp.abs(p)))
    pt = jnp.exp(-bce)
    focal = jnp.mean(((1.0 - pt) ** gamma) * bce)
    return dice_weight * dice_l + focal_weight * focal


if __name__ == "__main__":
    key = jax.random.PRNGKey(0)
    k1, k2 = jax.random.split(key)
    # Small NCHW segmentation-style inputs: logits + binary mask.
    y_pred = jax.random.normal(k1, (2, 4, 16, 16), dtype=jnp.float32)
    y_true = (jax.random.uniform(k2, (2, 4, 16, 16)) > 0.5).astype(jnp.float32)

    loss = combined_loss_pallas(y_pred, y_true)
    loss = jax.block_until_ready(loss)

    ref = combined_loss_ref(y_pred, y_true)
    assert jnp.allclose(loss, ref, rtol=1e-5, atol=1e-5), (loss, ref)

    # Also exercise a ragged, multi-block size to cover the masked edge path.
    k3, k4 = jax.random.split(k1)
    yp2 = jax.random.normal(k3, (3, 5, 37, 41), dtype=jnp.float32)
    yt2 = (jax.random.uniform(k4, (3, 5, 37, 41)) > 0.5).astype(jnp.float32)
    loss2 = jax.block_until_ready(combined_loss_pallas(yp2, yt2))
    ref2 = combined_loss_ref(yp2, yt2)
    assert jnp.allclose(loss2, ref2, rtol=1e-5, atol=1e-5), (loss2, ref2)

    print("KERNEL_OK")
</pallas_src>

<mosaic_0001>
module attributes {stable_mosaic.version = 11 : i64} {
  func.func @_combined_loss_kernel(%arg0: i32, %arg1: i32, %arg2: memref<32x128xf32, #tpu.memory_space<vmem>>, %arg3: memref<32x128xf32, #tpu.memory_space<vmem>>, %arg4: memref<1x3x8x128xf32, #tpu.memory_space<vmem>>) attributes {dimension_semantics = [#tpu.dimension_semantics<parallel>, #tpu.dimension_semantics<arbitrary>], iteration_bounds = array<i64: 1, 1>, scalar_prefetch = 0 : i64, scratch_operands = 0 : i64, tpu.core_type = #tpu.core_type<tc>, window_params = [{transform_indices = @transform_0, window_bounds = array<i64: 32, 128>}, {transform_indices = @transform_1, window_bounds = array<i64: 32, 128>}, {transform_indices = @transform_2, window_bounds = array<i64: 1, 3, 8, 128>}]} {
    %c0_i32 = arith.constant 0 : i32
    %0 = arith.cmpi eq, %arg1, %c0_i32 : i32
    %1 = arith.extui %0 : i1 to i32
    %c0_i32_0 = arith.constant 0 : i32
    %2 = arith.cmpi ne, %1, %c0_i32_0 : i32
    scf.if %2 {
      %cst = arith.constant 0.000000e+00 : f32
      %11 = vector.broadcast %cst : f32 to vector<3x8x128xf32>
      %c0 = arith.constant 0 : index
      %c0_5 = arith.constant 0 : index
      %c0_6 = arith.constant 0 : index
      %c0_7 = arith.constant 0 : index
      %12 = vector.load %arg4[%c0, %c0_5, %c0_6, %c0_7] : memref<1x3x8x128xf32, #tpu.memory_space<vmem>>, vector<1x3x8x128xf32>
      %13 = vector.shape_cast %12 : vector<1x3x8x128xf32> to vector<3x8x128xf32>
      %14 = vector.shape_cast %11 : vector<3x8x128xf32> to vector<1x3x8x128xf32>
      tpu.vector_store %arg4[%c0, %c0_5, %c0_6, %c0_7], %14 {strides = array<i32>} : memref<1x3x8x128xf32, #tpu.memory_space<vmem>>, vector<1x3x8x128xf32>,
    } else {
    }
    %c1_i32 = arith.constant 1 : i32
    %3 = arith.muli %arg0, %c1_i32 : i32
    %4 = arith.addi %3, %arg1 : i32
    %c0_i32_1 = arith.constant 0 : i32
    %5 = arith.cmpi slt, %4, %c0_i32_1 : i32
    %6 = arith.extui %5 : i1 to i32
    %c0_i32_2 = arith.constant 0 : i32
    %7 = arith.cmpi ne, %6, %c0_i32_2 : i32
    scf.if %7 {
      %cst = arith.constant 0.000000e+00 : f32
      %11 = vector.broadcast %cst : f32 to vector<8x128xf32>
      %c0_i32_5 = arith.constant 0 : i32
      %c32_i32 = arith.constant 32 : i32
      %12 = arith.muli %c0_i32_5, %c32_i32 : i32
      %13 = tpu.assume_multiple %12, 32 : i32
      %14 = arith.index_cast %13 : i32 to index
      %c0 = arith.constant 0 : index
      %15 = vector.load %arg2[%14, %c0] : memref<32x128xf32, #tpu.memory_space<vmem>>, vector<32x128xf32>
      %16 = arith.index_cast %13 : i32 to index
      %c0_6 = arith.constant 0 : index
      %17 = vector.load %arg3[%16, %c0_6] : memref<32x128xf32, #tpu.memory_space<vmem>>, vector<32x128xf32>
      %18 = arith.mulf %15, %17 : vector<32x128xf32>
      %cst_7 = arith.constant 0.000000e+00 : f32
      %19 = vector.broadcast %cst_7 : f32 to vector<32x128xf32>
      %20 = arith.maximumf %15, %19 : vector<32x128xf32>
      %21 = arith.subf %20, %18 : vector<32x128xf32>
      %22 = math.absf %15 : vector<32x128xf32>
      %cst_8 = arith.constant 0.000000e+00 : f32
      %23 = vector.broadcast %cst_8 : f32 to vector<32x128xf32>
      %24 = arith.subf %23, %22 : vector<32x128xf32>
      %25 = math.exp %24 : vector<32x128xf32>
      %26 = math.log1p %25 : vector<32x128xf32>
      %27 = arith.addf %21, %26 : vector<32x128xf32>
      %cst_9 = arith.constant 0.000000e+00 : f32
      %28 = vector.broadcast %cst_9 : f32 to vector<32x128xf32>
      %29 = arith.subf %28, %27 : vector<32x128xf32>
      %30 = math.exp %29 : vector<32x128xf32>
      %cst_10 = arith.constant 1.000000e+00 : f32
      %31 = vector.broadcast %cst_10 : f32 to vector<32x128xf32>
      %32 = arith.subf %31, %30 : vector<32x128xf32>
      %33 = arith.mulf %32, %32 : vector<32x128xf32>
      %34 = arith.mulf %33, %27 : vector<32x128xf32>
      %35 = vector.extract_strided_slice %18 {offsets = [0, 0], sizes = [8, 128], strides = [1, 1]} : vector<32x128xf32> to vector<8x128xf32>
      %36 = vector.extract_strided_slice %18 {offsets = [8, 0], sizes = [8, 128], strides = [1, 1]} : vector<32x128xf32> to vector<8x128xf32>
      %37 = arith.addf %35, %36 : vector<8x128xf32>
      %38 = vector.extract_strided_slice %18 {offsets = [16, 0], sizes = [8, 128], strides = [1, 1]} : vector<32x128xf32> to vector<8x128xf32>
      %39 = arith.addf %37, %38 : vector<8x128xf32>
      %40 = vector.extract_strided_slice %18 {offsets = [24, 0], sizes = [8, 128], strides = [1, 1]} : vector<32x128xf32> to vector<8x128xf32>
      %41 = arith.addf %39, %40 : vector<8x128xf32>
      %42 = arith.addf %11, %41 : vector<8x128xf32>
      %43 = arith.addf %15, %17 : vector<32x128xf32>
      %44 = vector.extract_strided_slice %43 {offsets = [0, 0], sizes = [8, 128], strides = [1, 1]} : vector<32x128xf32> to vector<8x128xf32>
      %45 = vector.extract_strided_slice %43 {offsets = [8, 0], sizes = [8, 128], strides = [1, 1]} : vector<32x128xf32> to vector<8x128xf32>
      %46 = arith.addf %44, %45 : vector<8x128xf32>
      %47 = vector.extract_strided_slice %43 {offsets = [16, 0], sizes = [8, 128], strides = [1, 1]} : vector<32x128xf32> to vector<8x128xf32>
      %48 = arith.addf %46, %47 : vector<8x128xf32>
      %49 = vector.extract_strided_slice %43 {offsets = [24, 0], sizes = [8, 128], strides = [1, 1]} : vector<32x128xf32> to vector<8x128xf32>
      %50 = arith.addf %48, %49 : vector<8x128xf32>
      %51 = arith.addf %11, %50 : vector<8x128xf32>
      %52 = vector.extract_strided_slice %34 {offsets = [0, 0], sizes = [8, 128], strides = [1, 1]} : vector<32x128xf32> to vector<8x128xf32>
      %53 = vector.extract_strided_slice %34 {offsets = [8, 0], sizes = [8, 128], strides = [1, 1]} : vector<32x128xf32> to vector<8x128xf32>
      %54 = arith.addf %52, %53 : vector<8x128xf32>
      %55 = vector.extract_strided_slice %34 {offsets = [16, 0], sizes = [8, 128], strides = [1, 1]} : vector<32x128xf32> to vector<8x128xf32>
      %56 = arith.addf %54, %55 : vector<8x128xf32>
      %57 = vector.extract_strided_slice %34 {offsets = [24, 0], sizes = [8, 128], strides = [1, 1]} : vector<32x128xf32> to vector<8x128xf32>
      %58 = arith.addf %56, %57 : vector<8x128xf32>
      %59 = arith.addf %11, %58 : vector<8x128xf32>
      %c1_i32_11 = arith.constant 1 : i32
      %c0_12 = arith.constant 0 : index
      %c0_13 = arith.constant 0 : index
      %c0_14 = arith.constant 0 : index
      %c0_15 = arith.constant 0 : index
      %60 = vector.load %arg4[%c0_12, %c0_13, %c0_14, %c0_15] : memref<1x3x8x128xf32, #tpu.memory_space<vmem>>, vector<1x1x8x128xf32>
      %61 = vector.shape_cast %60 : vector<1x1x8x128xf32> to vector<8x128xf32>
      %62 = arith.addf %61, %42 : vector<8x128xf32>
      %c0_16 = arith.constant 0 : index
      %c0_17 = arith.constant 0 : index
      %c0_18 = arith.constant 0 : index
      %c0_19 = arith.constant 0 : index
      %63 = vector.load %arg4[%c0_16, %c0_17, %c0_18, %c0_19] : memref<1x3x8x128xf32, #tpu.memory_space<vmem>>, vector<1x1x8x128xf32>
      %64 = vector.shape_cast %63 : vector<1x1x8x128xf32> to vector<8x128xf32>
      %65 = vector.shape_cast %62 : vector<8x128xf32> to vector<1x1x8x128xf32>
      tpu.vector_store %arg4[%c0_16, %c0_17, %c0_18, %c0_19], %65 {strides = array<i32>} : memref<1x3x8x128xf32, #tpu.memory_space<vmem>>, vector<1x1x8x128xf32>,
      %c0_20 = arith.constant 0 : index
      %c1 = arith.constant 1 : index
      %c0_21 = arith.constant 0 : index
      %c0_22 = arith.constant 0 : index
      %66 = vector.load %arg4[%c0_20, %c1, %c0_21, %c0_22] : memref<1x3x8x128xf32, #tpu.memory_space<vmem>>, vector<1x1x8x128xf32>
      %67 = vector.shape_cast %66 : vector<1x1x8x128xf32> to vector<8x128xf32>
      %68 = arith.addf %67, %51 : vector<8x128xf32>
      %c0_23 = arith.constant 0 : index
      %c1_24 = arith.constant 1 : index
      %c0_25 = arith.constant 0 : index
      %c0_26 = arith.constant 0 : index
      %69 = vector.load %arg4[%c0_23, %c1_24, %c0_25, %c0_26] : memref<1x3x8x128xf32, #tpu.memory_space<vmem>>, vector<1x1x8x128xf32>
      %70 = vector.shape_cast %69 : vector<1x1x8x128xf32> to vector<8x128xf32>
      %71 = vector.shape_cast %68 : vector<8x128xf32> to vector<1x1x8x128xf32>
      tpu.vector_store %arg4[%c0_23, %c1_24, %c0_25, %c0_26], %71 {strides = array<i32>} : memref<1x3x8x128xf32, #tpu.memory_space<vmem>>, vector<1x1x8x128xf32>,
      %c0_27 = arith.constant 0 : index
      %c2 = arith.constant 2 : index
      %c0_28 = arith.constant 0 : index
      %c0_29 = arith.constant 0 : index
      %72 = vector.load %arg4[%c0_27, %c2, %c0_28, %c0_29] : memref<1x3x8x128xf32, #tpu.memory_space<vmem>>, vector<1x1x8x128xf32>
      %73 = vector.shape_cast %72 : vector<1x1x8x128xf32> to vector<8x128xf32>
      %74 = arith.addf %73, %59 : vector<8x128xf32>
      %c0_30 = arith.constant 0 : index
      %c2_31 = arith.constant 2 : index
      %c0_32 = arith.constant 0 : index
      %c0_33 = arith.constant 0 : index
      %75 = vector.load %arg4[%c0_30, %c2_31, %c0_32, %c0_33] : memref<1x3x8x128xf32, #tpu.memory_space<vmem>>, vector<1x1x8x128xf32>
      %76 = vector.shape_cast %75 : vector<1x1x8x128xf32> to vector<8x128xf32>
      %77 = vector.shape_cast %74 : vector<8x128xf32> to vector<1x1x8x128xf32>
      tpu.vector_store %arg4[%c0_30, %c2_31, %c0_32, %c0_33], %77 {strides = array<i32>} : memref<1x3x8x128xf32, #tpu.memory_space<vmem>>, vector<1x1x8x128xf32>,
    } else {
    }
    %c0_i32_3 = arith.constant 0 : i32
    %8 = arith.cmpi sge, %4, %c0_i32_3 : i32
    %9 = arith.extui %8 : i1 to i32
    %c0_i32_4 = arith.constant 0 : i32
    %10 = arith.cmpi ne, %9, %c0_i32_4 : i32
    scf.if %10 {
      %11 = tpu.iota {dimensions = array<i32: 0>} : vector<32x128xi32>
      %c32_i32 = arith.constant 32 : i32
      %12 = arith.muli %4, %c32_i32 : i32
      %cst = arith.constant 0.000000e+00 : f32
      %13 = vector.broadcast %cst : f32 to vector<8x128xf32>
      %c0_i32_5 = arith.constant 0 : i32
      %c32_i32_6 = arith.constant 32 : i32
      %14 = arith.muli %c0_i32_5, %c32_i32_6 : i32
      %15 = tpu.assume_multiple %14, 32 : i32
      %16 = arith.index_cast %15 : i32 to index
      %c0 = arith.constant 0 : index
      %17 = vector.load %arg2[%16, %c0] : memref<32x128xf32, #tpu.memory_space<vmem>>, vector<32x128xf32>
      %18 = arith.index_cast %15 : i32 to index
      %c0_7 = arith.constant 0 : index
      %19 = vector.load %arg3[%18, %c0_7] : memref<32x128xf32, #tpu.memory_space<vmem>>, vector<32x128xf32>
      %20 = arith.addi %12, %15 : i32
      %21 = vector.broadcast %20 : i32 to vector<32x128xi32>
      %22 = arith.addi %21, %11 : vector<32x128xi32>
      %c16_i32 = arith.constant 16 : i32
      %23 = vector.broadcast %c16_i32 : i32 to vector<32x128xi32>
      %24 = arith.cmpi slt, %22, %23 : vector<32x128xi32>
      %cst_8 = arith.constant 0.000000e+00 : f32
      %25 = vector.broadcast %cst_8 : f32 to vector<32x128xf32>
      %26 = arith.select %24, %17, %25 : vector<32x128xi1>, vector<32x128xf32>
      %cst_9 = arith.constant 0.000000e+00 : f32
      %27 = vector.broadcast %cst_9 : f32 to vector<32x128xf32>
      %28 = arith.select %24, %19, %27 : vector<32x128xi1>, vector<32x128xf32>
      %29 = arith.mulf %26, %28 : vector<32x128xf32>
      %cst_10 = arith.constant 0.000000e+00 : f32
      %30 = vector.broadcast %cst_10 : f32 to vector<32x128xf32>
      %31 = arith.maximumf %26, %30 : vector<32x128xf32>
      %32 = arith.subf %31, %29 : vector<32x128xf32>
      %33 = math.absf %26 : vector<32x128xf32>
      %cst_11 = arith.constant 0.000000e+00 : f32
      %34 = vector.broadcast %cst_11 : f32 to vector<32x128xf32>
      %35 = arith.subf %34, %33 : vector<32x128xf32>
      %36 = math.exp %35 : vector<32x128xf32>
      %37 = math.log1p %36 : vector<32x128xf32>
      %38 = arith.addf %32, %37 : vector<32x128xf32>
      %cst_12 = arith.constant 0.000000e+00 : f32
      %39 = vector.broadcast %cst_12 : f32 to vector<32x128xf32>
      %40 = arith.subf %39, %38 : vector<32x128xf32>
      %41 = math.exp %40 : vector<32x128xf32>
      %cst_13 = arith.constant 1.000000e+00 : f32
      %42 = vector.broadcast %cst_13 : f32 to vector<32x128xf32>
      %43 = arith.subf %42, %41 : vector<32x128xf32>
      %44 = arith.mulf %43, %43 : vector<32x128xf32>
      %45 = arith.mulf %44, %38 : vector<32x128xf32>
      %cst_14 = arith.constant 0.000000e+00 : f32
      %46 = vector.broadcast %cst_14 : f32 to vector<32x128xf32>
      %47 = arith.select %24, %45, %46 : vector<32x128xi1>, vector<32x128xf32>
      %48 = vector.extract_strided_slice %29 {offsets = [0, 0], sizes = [8, 128], strides = [1, 1]} : vector<32x128xf32> to vector<8x128xf32>
      %49 = vector.extract_strided_slice %29 {offsets = [8, 0], sizes = [8, 128], strides = [1, 1]} : vector<32x128xf32> to vector<8x128xf32>
      %50 = arith.addf %48, %49 : vector<8x128xf32>
      %51 = vector.extract_strided_slice %29 {offsets = [16, 0], sizes = [8, 128], strides = [1, 1]} : vector<32x128xf32> to vector<8x128xf32>
      %52 = arith.addf %50, %51 : vector<8x128xf32>
      %53 = vector.extract_strided_slice %29 {offsets = [24, 0], sizes = [8, 128], strides = [1, 1]} : vector<32x128xf32> to vector<8x128xf32>
      %54 = arith.addf %52, %53 : vector<8x128xf32>
      %55 = arith.addf %13, %54 : vector<8x128xf32>
      %56 = arith.addf %26, %28 : vector<32x128xf32>
      %57 = vector.extract_strided_slice %56 {offsets = [0, 0], sizes = [8, 128], strides = [1, 1]} : vector<32x128xf32> to vector<8x128xf32>
      %58 = vector.extract_strided_slice %56 {offsets = [8, 0], sizes = [8, 128], strides = [1, 1]} : vector<32x128xf32> to vector<8x128xf32>
      %59 = arith.addf %57, %58 : vector<8x128xf32>
      %60 = vector.extract_strided_slice %56 {offsets = [16, 0], sizes = [8, 128], strides = [1, 1]} : vector<32x128xf32> to vector<8x128xf32>
      %61 = arith.addf %59, %60 : vector<8x128xf32>
      %62 = vector.extract_strided_slice %56 {offsets = [24, 0], sizes = [8, 128], strides = [1, 1]} : vector<32x128xf32> to vector<8x128xf32>
      %63 = arith.addf %61, %62 : vector<8x128xf32>
      %64 = arith.addf %13, %63 : vector<8x128xf32>
      %65 = vector.extract_strided_slice %47 {offsets = [0, 0], sizes = [8, 128], strides = [1, 1]} : vector<32x128xf32> to vector<8x128xf32>
      %66 = vector.extract_strided_slice %47 {offsets = [8, 0], sizes = [8, 128], strides = [1, 1]} : vector<32x128xf32> to vector<8x128xf32>
      %67 = arith.addf %65, %66 : vector<8x128xf32>
      %68 = vector.extract_strided_slice %47 {offsets = [16, 0], sizes = [8, 128], strides = [1, 1]} : vector<32x128xf32> to vector<8x128xf32>
      %69 = arith.addf %67, %68 : vector<8x128xf32>
      %70 = vector.extract_strided_slice %47 {offsets = [24, 0], sizes = [8, 128], strides = [1, 1]} : vector<32x128xf32> to vector<8x128xf32>
      %71 = arith.addf %69, %70 : vector<8x128xf32>
      %72 = arith.addf %13, %71 : vector<8x128xf32>
      %c1_i32_15 = arith.constant 1 : i32
      %c0_16 = arith.constant 0 : index
      %c0_17 = arith.constant 0 : index
      %c0_18 = arith.constant 0 : index
      %c0_19 = arith.constant 0 : index
      %73 = vector.load %arg4[%c0_16, %c0_17, %c0_18, %c0_19] : memref<1x3x8x128xf32, #tpu.memory_space<vmem>>, vector<1x1x8x128xf32>
      %74 = vector.shape_cast %73 : vector<1x1x8x128xf32> to vector<8x128xf32>
      %75 = arith.addf %74, %55 : vector<8x128xf32>
      %c0_20 = arith.constant 0 : index
      %c0_21 = arith.constant 0 : index
      %c0_22 = arith.constant 0 : index
      %c0_23 = arith.constant 0 : index
      %76 = vector.load %arg4[%c0_20, %c0_21, %c0_22, %c0_23] : memref<1x3x8x128xf32, #tpu.memory_space<vmem>>, vector<1x1x8x128xf32>
      %77 = vector.shape_cast %76 : vector<1x1x8x128xf32> to vector<8x128xf32>
      %78 = vector.shape_cast %75 : vector<8x128xf32> to vector<1x1x8x128xf32>
      tpu.vector_store %arg4[%c0_20, %c0_21, %c0_22, %c0_23], %78 {strides = array<i32>} : memref<1x3x8x128xf32, #tpu.memory_space<vmem>>, vector<1x1x8x128xf32>,
      %c0_24 = arith.constant 0 : index
      %c1 = arith.constant 1 : index
      %c0_25 = arith.constant 0 : index
      %c0_26 = arith.constant 0 : index
      %79 = vector.load %arg4[%c0_24, %c1, %c0_25, %c0_26] : memref<1x3x8x128xf32, #tpu.memory_space<vmem>>, vector<1x1x8x128xf32>
      %80 = vector.shape_cast %79 : vector<1x1x8x128xf32> to vector<8x128xf32>
      %81 = arith.addf %80, %64 : vector<8x128xf32>
      %c0_27 = arith.constant 0 : index
      %c1_28 = arith.constant 1 : index
      %c0_29 = arith.constant 0 : index
      %c0_30 = arith.constant 0 : index
      %82 = vector.load %arg4[%c0_27, %c1_28, %c0_29, %c0_30] : memref<1x3x8x128xf32, #tpu.memory_space<vmem>>, vector<1x1x8x128xf32>
      %83 = vector.shape_cast %82 : vector<1x1x8x128xf32> to vector<8x128xf32>
      %84 = vector.shape_cast %81 : vector<8x128xf32> to vector<1x1x8x128xf32>
      tpu.vector_store %arg4[%c0_27, %c1_28, %c0_29, %c0_30], %84 {strides = array<i32>} : memref<1x3x8x128xf32, #tpu.memory_space<vmem>>, vector<1x1x8x128xf32>,
      %c0_31 = arith.constant 0 : index
      %c2 = arith.constant 2 : index
      %c0_32 = arith.constant 0 : index
      %c0_33 = arith.constant 0 : index
      %85 = vector.load %arg4[%c0_31, %c2, %c0_32, %c0_33] : memref<1x3x8x128xf32, #tpu.memory_space<vmem>>, vector<1x1x8x128xf32>
      %86 = vector.shape_cast %85 : vector<1x1x8x128xf32> to vector<8x128xf32>
      %87 = arith.addf %86, %72 : vector<8x128xf32>
      %c0_34 = arith.constant 0 : index
      %c2_35 = arith.constant 2 : index
      %c0_36 = arith.constant 0 : index
      %c0_37 = arith.constant 0 : index
      %88 = vector.load %arg4[%c0_34, %c2_35, %c0_36, %c0_37] : memref<1x3x8x128xf32, #tpu.memory_space<vmem>>, vector<1x1x8x128xf32>
      %89 = vector.shape_cast %88 : vector<1x1x8x128xf32> to vector<8x128xf32>
      %90 = vector.shape_cast %87 : vector<8x128xf32> to vector<1x1x8x128xf32>
      tpu.vector_store %arg4[%c0_34, %c2_35, %c0_36, %c0_37], %90 {strides = array<i32>} : memref<1x3x8x128xf32, #tpu.memory_space<vmem>>, vector<1x1x8x128xf32>,
    } else {
    }
    return
  }
  func.func @transform_0(%arg0: i32, %arg1: i32) -> (i32, i32) {
    %c1_i32 = arith.constant 1 : i32
    %0 = arith.muli %arg0, %c1_i32 : i32
    %1 = arith.addi %0, %arg1 : i32
    %c0_i32 = arith.constant 0 : i32
    %2 = arith.minsi %1, %c0_i32 : i32
    %c0_i32_0 = arith.constant 0 : i32
    %c0_i32_1 = arith.constant 0 : i32
    return %2, %c0_i32_0 : i32, i32
  }
  func.func @transform_1(%arg0: i32, %arg1: i32) -> (i32, i32) {
    %c1_i32 = arith.constant 1 : i32
    %0 = arith.muli %arg0, %c1_i32 : i32
    %1 = arith.addi %0, %arg1 : i32
    %c0_i32 = arith.constant 0 : i32
    %2 = arith.minsi %1, %c0_i32 : i32
    %c0_i32_0 = arith.constant 0 : i32
    %c0_i32_1 = arith.constant 0 : i32
    return %2, %c0_i32_0 : i32, i32
  }
  func.func @transform_2(%arg0: i32, %arg1: i32) -> (i32, i32, i32, i32) {
    %c0_i32 = arith.constant 0 : i32
    %c0_i32_0 = arith.constant 0 : i32
    %c0_i32_1 = arith.constant 0 : i32
    %c0_i32_2 = arith.constant 0 : i32
    return %arg0, %c0_i32, %c0_i32_0, %c0_i32_1 : i32, i32, i32, i32
  }
}

</mosaic_0001>

<llo_original>
// kernel: tpu_custom_call.1
$region0: #{tpu_custom_call.1}
  #allocation0 [shape = 'u32[]', space=smem, size = 0x4, offset = 0x4, fixed_abs, tag = 'smem constant byte address 0x4 - core index']
  #allocation1 [shape = 'u32[144,128]{1,0:T(1,128)}', space=vmem, size = 0x12000, scoped, tag = 'internal scratch']
  %s0 = inlined_call_operand.hbm [shape: f32[16,128], index: 0, kind: input, shape index: {}]
  %s1 = inlined_call_operand.hbm [shape: f32[16,128], index: 1, kind: input, shape index: {}]
  %s2 = inlined_call_operand.hbm [shape: f32[1,3,8,128], index: 2, kind: output, shape index: {}]
  %s3 = sld [smem:[#allocation0]]
  $region38: #{tpu_custom_call.1} parent=0
    _
  %s5 = ssub.s32 1, %s3
  %s6 = scalar_select 0, %s5, %s3
  $region1: #{tpu_custom_call.1} parent=0
    #allocation2 [shape = 'u8[16384]{0}', space=vmem, size = 0x4000, scoped, tag = 'input window, operand 0, single buffered']
    #allocation3 [shape = 's32[1]{0}', space=sflag, size = 0x4, scoped, tag = 'scoped memory for tpu_custom_call.1']
    #allocation4 [shape = 's32[1]{0}', space=sflag, size = 0x4, scoped, tag = 'scoped memory for tpu_custom_call.1']
    #allocation5 [shape = 'u8[16384]{0}', space=vmem, size = 0x4000, scoped, tag = 'input window, operand 1, single buffered']
    #allocation6 [shape = 's32[1]{0}', space=sflag, size = 0x4, scoped, tag = 'scoped memory for tpu_custom_call.1']
    #allocation7 [shape = 'u8[12288]{0}', space=vmem, size = 0x3000, scoped, tag = 'output window, operand 0, single buffered']
    %7 = vsyncpa [#allocation3], 0
    %8 = vsyncpa [#allocation6], 0
    %9 = vsyncpa [#allocation4], 0
    // Predicated region
    $region2: #{tpu_custom_call.1} parent=1 // pred_check
      _
    $region3: #{tpu_custom_call.1} parent=1 // pred_check_branch
      %11 = sbr.rel (0) target = $region5
    $region4: #{tpu_custom_call.1} parent=1 // pred_region
      %s12 = sadd.s32 0, 0
      %p13 = scmp.lt.s32.totalorder %s12, 0
      %s14 = scalar_select %p13, %s12, 0
      %s15 = smul.u32 4, %s14
      %s16 = ssub.s32 2, %s15
      %s17 = smul.u32 128, %s16
      %s19 = ssub.s32 512, %s17
      %20 = vsyncadd [#allocation3], %s19
      %p21 = scmp.ne.s32.totalorder 0, %s17
      %s22 = smul.addr %s15, 128
      %s23 = scalar_lea.hbm %s0, %s22
      %s24 = smul.u32 8, %s16
      %s25 = sshll.u32 [#allocation2], 4
      %s26 = int_to_ptr.vmem [resolvable:$true] %s25
      %s27 = sshll.u32 %s24, 4
      %31 = dma.hbm_to_vmem [thread:$0]  (%p21), %s23, %s27, %s26, [#allocation3], 128, 128, 8
    $region5: #{tpu_custom_call.1} parent=1 // pred_fallthru
      _
    // Predicated region
    $region6: #{tpu_custom_call.1} parent=1 // pred_check
      _
    $region7: #{tpu_custom_call.1} parent=1 // pred_check_branch
      %33 = sbr.rel (0) target = $region9
    $region8: #{tpu_custom_call.1} parent=1 // pred_region
      %s34 = sadd.s32 0, 0
      %p35 = scmp.lt.s32.totalorder %s34, 0
      %s36 = scalar_select %p35, %s34, 0
      %s37 = smul.u32 4, %s36
      %s38 = ssub.s32 2, %s37
      %s39 = smul.u32 128, %s38
      %s41 = ssub.s32 512, %s39
      %42 = vsyncadd [#allocation6], %s41
      %p43 = scmp.ne.s32.totalorder 0, %s39
      %s44 = smul.addr %s37, 128
      %s45 = scalar_lea.hbm %s1, %s44
      %s46 = smul.u32 8, %s38
      %s47 = sshll.u32 [#allocation5], 4
      %s48 = int_to_ptr.vmem [resolvable:$true] %s47
      %s49 = sshll.u32 %s46, 4
      %53 = dma.hbm_to_vmem [thread:$0]  (%p43), %s45, %s49, %s48, [#allocation6], 128, 128, 8
    $region9: #{tpu_custom_call.1} parent=1 // pred_fallthru
      _
    // Predicated region
    $region10: #{tpu_custom_call.1} parent=1 // pred_check
      _
    $region11: #{tpu_custom_call.1} parent=1 // pred_check_branch
      %55 = sbr.rel (0) target = $region13
    $region12: #{tpu_custom_call.1} parent=1 // pred_region
      %56 = dma.done [#allocation3], 512
    $region13: #{tpu_custom_call.1} parent=1 // pred_fallthru
      _
    // Predicated region
    $region14: #{tpu_custom_call.1} parent=1 // pred_check
      _
    $region15: #{tpu_custom_call.1} parent=1 // pred_check_branch
      %58 = sbr.rel (0) target = $region17
    $region16: #{tpu_custom_call.1} parent=1 // pred_region
      %59 = dma.done [#allocation6], 512
    $region17: #{tpu_custom_call.1} parent=1 // pred_fallthru
      _
    %s60 = sadd.s32 0, 0
    %p61 = scmp.lt.s32.totalorder %s60, 0
    %s62 = scalar_select %p61, %s60, 0
    %s63 = smul.u32 4, %s62
    %s64 = ssub.s32 2, %s63
    %s65 = smul.u32 128, %s64
    %s66 = sadd.s32 0, 0
    %p67 = scmp.lt.s32.totalorder %s66, 0
    %s68 = scalar_select %p67, %s66, 0
    %s69 = smul.u32 4, %s68
    %s70 = ssub.s32 2, %s69
    %s71 = smul.u32 128, %s70
    %p72 = scmp.eq.s32.totalorder 0, 0
    // Predicated region
    $region18: #{tpu_custom_call.1} parent=1 // pred_check
      %p73 = pneg %p72
    $region19: #{tpu_custom_call.1} parent=1 // pred_check_branch
      %75 = sbr.rel (%p73) target = $region21
    $region20: #{tpu_custom_call.1} parent=1 // pred_region
      %76 = vst [vmem:[#allocation7] sm:$0xff] 0.0
      %77 = vst [vmem:[#allocation7 + $0x8] sm:$0xff] 0.0
      %78 = vst [vmem:[#allocation7 + $0x10] sm:$0xff] 0.0
    $region21: #{tpu_custom_call.1} parent=1 // pred_fallthru
      _
    %s79 = sadd.s32 0, 0
    %p80 = scmp.lt.s32.totalorder %s79, 0
    // Predicated region
    $region22: #{tpu_custom_call.1} parent=1 // pred_check
      %p81 = pneg %p80
    $region23: #{tpu_custom_call.1} parent=1 // pred_check_branch
      %83 = sbr.rel (%p81) target = $region25
    $region24: #{tpu_custom_call.1} parent=1 // pred_region
      %v84 = vld [vmem:[#allocation2] sm:$0xff]
      %v85 = vld [vmem:[#allocation2 + $0x8] sm:$0xff]
      %v86 = vld [vmem:[#allocation2 + $0x10] sm:$0xff]
      %v87 = vld [vmem:[#allocation2 + $0x18] sm:$0xff]
      %v88 = vld [vmem:[#allocation5] sm:$0xff]
      %v89 = vld [vmem:[#allocation5 + $0x8] sm:$0xff]
      %v90 = vld [vmem:[#allocation5 + $0x10] sm:$0xff]
      %v91 = vld [vmem:[#allocation5 + $0x18] sm:$0xff]
      %v92 = vmul.f32 %v84, %v88
      %v93 = vmul.f32 %v85, %v89
      %v94 = vmul.f32 %v86, %v90
      %v95 = vmul.f32 %v87, %v91
      %v96 = vmax.f32 %v84, 0.0
      %v97 = vmax.f32 %v85, 0.0
      %v98 = vmax.f32 %v86, 0.0
      %v99 = vmax.f32 %v87, 0.0
      %v100 = vsub.f32 %v96, %v92
      %v101 = vsub.f32 %v97, %v93
      %v102 = vsub.f32 %v98, %v94
      %v103 = vsub.f32 %v99, %v95
      %v104 = vand.u32 2147483647, %v84
      %v105 = vand.u32 2147483647, %v85
      %v106 = vand.u32 2147483647, %v86
      %v107 = vand.u32 2147483647, %v87
      %v108 = vsub.f32 0.0, %v104
      %v109 = vsub.f32 0.0, %v105
      %v110 = vsub.f32 0.0, %v106
      %v111 = vsub.f32 0.0, %v107
      %v112 = vmul.f32 %v108, 1.442695
      %v113 = vpow.pop %v112
      %v114 = vmul.f32 %v109, 1.442695
      %v115 = vpow.pop %v114
      %v116 = vmul.f32 %v110, 1.442695
      %v117 = vpow.pop %v116
      %v118 = vmul.f32 %v111, 1.442695
      %v119 = vpow.pop %v118
      %v120 = vadd.f32 %v113, 1.0
      %v121 = vlog2.pop %v120
      %v122 = vmul.f32 %v121, 0.6931472
      %v123 = vmul.f32 -0.5, %v113
      %v124 = vadd.f32 %v123, 1.0
      %v125 = vmul.f32 %v124, %v113
      %v126 = vand.u32 2147483647, %v113
      %vm127 = vcmp.lt.f32.partialorder %v126, 0.0004427343
      %v128 = vsel %vm127, %v125, %v122
      %v129 = vadd.f32 %v115, 1.0
      %v130 = vlog2.pop %v129
      %v131 = vmul.f32 %v130, 0.6931472
      %v132 = vmul.f32 -0.5, %v115
      %v133 = vadd.f32 %v132, 1.0
      %v134 = vmul.f32 %v133, %v115
      %v135 = vand.u32 2147483647, %v115
      %vm136 = vcmp.lt.f32.partialorder %v135, 0.0004427343
      %v137 = vsel %vm136, %v134, %v131
      %v138 = vadd.f32 %v117, 1.0
      %v139 = vlog2.pop %v138
      %v140 = vmul.f32 %v139, 0.6931472
      %v141 = vmul.f32 -0.5, %v117
      %v142 = vadd.f32 %v141, 1.0
      %v143 = vmul.f32 %v142, %v117
      %v144 = vand.u32 2147483647, %v117
      %vm145 = vcmp.lt.f32.partialorder %v144, 0.0004427343
      %v146 = vsel %vm145, %v143, %v140
      %v147 = vadd.f32 %v119, 1.0
      %v148 = vlog2.pop %v147
      %v149 = vmul.f32 %v148, 0.6931472
      %v150 = vmul.f32 -0.5, %v119
      %v151 = vadd.f32 %v150, 1.0
      %v152 = vmul.f32 %v151, %v119
      %v153 = vand.u32 2147483647, %v119
      %vm154 = vcmp.lt.f32.partialorder %v153, 0.0004427343
      %v155 = vsel %vm154, %v152, %v149
      %v156 = vadd.f32 %v100, %v128
      %v157 = vadd.f32 %v101, %v137
      %v158 = vadd.f32 %v102, %v146
      %v159 = vadd.f32 %v103, %v155
      %v160 = vsub.f32 0.0, %v156
      %v161 = vsub.f32 0.0, %v157
      %v162 = vsub.f32 0.0, %v158
      %v163 = vsub.f32 0.0, %v159
      %v164 = vmul.f32 %v160, 1.442695
      %v165 = vpow.pop %v164
      %v166 = vmul.f32 %v161, 1.442695
      %v167 = vpow.pop %v166
      %v168 = vmul.f32 %v162, 1.442695
      %v169 = vpow.pop %v168
      %v170 = vmul.f32 %v163, 1.442695
      %v171 = vpow.pop %v170
      %v172 = vsub.f32 1.0, %v165
      %v173 = vsub.f32 1.0, %v167
      %v174 = vsub.f32 1.0, %v169
      %v175 = vsub.f32 1.0, %v171
      %v176 = vmul.f32 %v172, %v172
      %v177 = vmul.f32 %v173, %v173
      %v178 = vmul.f32 %v174, %v174
      %v179 = vmul.f32 %v175, %v175
      %v180 = vmul.f32 %v176, %v156
      %v181 = vmul.f32 %v177, %v157
      %v182 = vmul.f32 %v178, %v158
      %v183 = vmul.f32 %v179, %v159
      %v184 = vadd.f32 %v92, %v93
      %v185 = vadd.f32 %v184, %v94
      %v186 = vadd.f32 %v185, %v95
      %v187 = vadd.f32 %v186, 0.0
      %v188 = vadd.f32 %v84, %v88
      %v189 = vadd.f32 %v85, %v89
      %v190 = vadd.f32 %v86, %v90
      %v191 = vadd.f32 %v87, %v91
      %v192 = vadd.f32 %v188, %v189
      %v193 = vadd.f32 %v192, %v190
      %v194 = vadd.f32 %v193, %v191
      %v195 = vadd.f32 %v194, 0.0
      %v196 = vadd.f32 %v180, %v181
      %v197 = vadd.f32 %v196, %v182
      %v198 = vadd.f32 %v197, %v183
      %v199 = vadd.f32 %v198, 0.0
      %v200 = vld [vmem:[#allocation7] sm:$0xff]
      %v201 = vadd.f32 %v200, %v187
      %202 = vst [vmem:[#allocation7] sm:$0xff] %v201
      %s203 = scalar_lea.vmem [#allocation7], 8
      %v204 = vld [vmem:[%s203] sm:$0xff]
      %v205 = vadd.f32 %v204, %v195
      %206 = vst [vmem:[%s203] sm:$0xff] %v205
      %s207 = scalar_lea.vmem [#allocation7], 16
      %v208 = vld [vmem:[%s207] sm:$0xff]
      %v209 = vadd.f32 %v208, %v199
      %210 = vst [vmem:[%s207] sm:$0xff] %v209
    $region25: #{tpu_custom_call.1} parent=1 // pred_fallthru
      _
    %p211 = scmp.ge.s32.totalorder %s79, 0
    // Predicated region
    $region26: #{tpu_custom_call.1} parent=1 // pred_check
      %p212 = pneg %p211
    $region27: #{tpu_custom_call.1} parent=1 // pred_check_branch
      %214 = sbr.rel (%p212) target = $region29
    $region28: #{tpu_custom_call.1} parent=1 // pred_region
      %v215 = vlaneseq
      %v216 = vshrl.u32 %v215, 7
      %v217 = vadd.s32 %v216, 8
      %v218 = vadd.s32 %v216, 16
      %v219 = vadd.s32 %v216, 24
      %s220 = smul.u32 %s79, 32
      %v221 = vld [vmem:[#allocation2] sm:$0xff]
      %v222 = vld [vmem:[#allocation2 + $0x8] sm:$0xff]
      %v223 = vld [vmem:[#allocation2 + $0x10] sm:$0xff]
      %v224 = vld [vmem:[#allocation2 + $0x18] sm:$0xff]
      %v225 = vld [vmem:[#allocation5] sm:$0xff]
      %v226 = vld [vmem:[#allocation5 + $0x8] sm:$0xff]
      %v227 = vld [vmem:[#allocation5 + $0x10] sm:$0xff]
      %v228 = vld [vmem:[#allocation5 + $0x18] sm:$0xff]
      %s229 = sadd.s32 %s220, 0
      %v230 = vstv %s229
      %v231 = vadd.s32 %v230, %v216
      %v232 = vadd.s32 %v230, %v217
      %v233 = vadd.s32 %v230, %v218
      %v234 = vadd.s32 %v230, %v219
      %vm235 = vcmp.lt.s32.totalorder %v231, 16
      %vm236 = vcmp.lt.s32.totalorder %v232, 16
      %vm237 = vcmp.lt.s32.totalorder %v233, 16
      %vm238 = vcmp.lt.s32.totalorder %v234, 16
      %v239 = vsel %vm235, %v221, 0.0
      %v240 = vsel %vm236, %v222, 0.0
      %v241 = vsel %vm237, %v223, 0.0
      %v242 = vsel %vm238, %v224, 0.0
      %v243 = vsel %vm235, %v225, 0.0
      %v244 = vsel %vm236, %v226, 0.0
      %v245 = vsel %vm237, %v227, 0.0
      %v246 = vsel %vm238, %v228, 0.0
      %v247 = vmul.f32 %v239, %v243
      %v248 = vmul.f32 %v240, %v244
      %v249 = vmul.f32 %v241, %v245
      %v250 = vmul.f32 %v242, %v246
      %v251 = vmax.f32 %v239, 0.0
      %v252 = vmax.f32 %v240, 0.0
      %v253 = vmax.f32 %v241, 0.0
      %v254 = vmax.f32 %v242, 0.0
      %v255 = vsub.f32 %v251, %v247
      %v256 = vsub.f32 %v252, %v248
      %v257 = vsub.f32 %v253, %v249
      %v258 = vsub.f32 %v254, %v250
      %v259 = vand.u32 2147483647, %v239
      %v260 = vand.u32 2147483647, %v240
      %v261 = vand.u32 2147483647, %v241
      %v262 = vand.u32 2147483647, %v242
      %v263 = vsub.f32 0.0, %v259
      %v264 = vsub.f32 0.0, %v260
      %v265 = vsub.f32 0.0, %v261
      %v266 = vsub.f32 0.0, %v262
      %v267 = vmul.f32 %v263, 1.442695
      %v268 = vpow.pop %v267
      %v269 = vmul.f32 %v264, 1.442695
      %v270 = vpow.pop %v269
      %v271 = vmul.f32 %v265, 1.442695
      %v272 = vpow.pop %v271
      %v273 = vmul.f32 %v266, 1.442695
      %v274 = vpow.pop %v273
      %v275 = vadd.f32 %v268, 1.0
      %v276 = vlog2.pop %v275
      %v277 = vmul.f32 %v276, 0.6931472
      %v278 = vmul.f32 -0.5, %v268
      %v279 = vadd.f32 %v278, 1.0
      %v280 = vmul.f32 %v279, %v268
      %v281 = vand.u32 2147483647, %v268
      %vm282 = vcmp.lt.f32.partialorder %v281, 0.0004427343
      %v283 = vsel %vm282, %v280, %v277
      %v284 = vadd.f32 %v270, 1.0
      %v285 = vlog2.pop %v284
      %v286 = vmul.f32 %v285, 0.6931472
      %v287 = vmul.f32 -0.5, %v270
      %v288 = vadd.f32 %v287, 1.0
      %v289 = vmul.f32 %v288, %v270
      %v290 = vand.u32 2147483647, %v270
      %vm291 = vcmp.lt.f32.partialorder %v290, 0.0004427343
      %v292 = vsel %vm291, %v289, %v286
      %v293 = vadd.f32 %v272, 1.0
      %v294 = vlog2.pop %v293
      %v295 = vmul.f32 %v294, 0.6931472
      %v296 = vmul.f32 -0.5, %v272
      %v297 = vadd.f32 %v296, 1.0
      %v298 = vmul.f32 %v297, %v272
      %v299 = vand.u32 2147483647, %v272
      %vm300 = vcmp.lt.f32.partialorder %v299, 0.0004427343
      %v301 = vsel %vm300, %v298, %v295
      %v302 = vadd.f32 %v274, 1.0
      %v303 = vlog2.pop %v302
      %v304 = vmul.f32 %v303, 0.6931472
      %v305 = vmul.f32 -0.5, %v274
      %v306 = vadd.f32 %v305, 1.0
      %v307 = vmul.f32 %v306, %v274
      %v308 = vand.u32 2147483647, %v274
      %vm309 = vcmp.lt.f32.partialorder %v308, 0.0004427343
      %v310 = vsel %vm309, %v307, %v304
      %v311 = vadd.f32 %v255, %v283
      %v312 = vadd.f32 %v256, %v292
      %v313 = vadd.f32 %v257, %v301
      %v314 = vadd.f32 %v258, %v310
      %v315 = vsub.f32 0.0, %v311
      %v316 = vsub.f32 0.0, %v312
      %v317 = vsub.f32 0.0, %v313
      %v318 = vsub.f32 0.0, %v314
      %v319 = vmul.f32 %v315, 1.442695
      %v320 = vpow.pop %v319
      %v321 = vmul.f32 %v316, 1.442695
      %v322 = vpow.pop %v321
      %v323 = vmul.f32 %v317, 1.442695
      %v324 = vpow.pop %v323
      %v325 = vmul.f32 %v318, 1.442695
      %v326 = vpow.pop %v325
      %v327 = vsub.f32 1.0, %v320
      %v328 = vsub.f32 1.0, %v322
      %v329 = vsub.f32 1.0, %v324
      %v330 = vsub.f32 1.0, %v326
      %v331 = vmul.f32 %v327, %v327
      %v332 = vmul.f32 %v328, %v328
      %v333 = vmul.f32 %v329, %v329
      %v334 = vmul.f32 %v330, %v330
      %v335 = vmul.f32 %v331, %v311
      %v336 = vmul.f32 %v332, %v312
      %v337 = vmul.f32 %v333, %v313
      %v338 = vmul.f32 %v334, %v314
      %v339 = vsel %vm235, %v335, 0.0
      %v340 = vsel %vm236, %v336, 0.0
      %v341 = vsel %vm237, %v337, 0.0
      %v342 = vsel %vm238, %v338, 0.0
      %v343 = vadd.f32 %v247, %v248
      %v344 = vadd.f32 %v343, %v249
      %v345 = vadd.f32 %v344, %v250
      %v346 = vadd.f32 %v345, 0.0
      %v347 = vadd.f32 %v239, %v243
      %v348 = vadd.f32 %v240, %v244
      %v349 = vadd.f32 %v241, %v245
      %v350 = vadd.f32 %v242, %v246
      %v351 = vadd.f32 %v347, %v348
      %v352 = vadd.f32 %v351, %v349
      %v353 = vadd.f32 %v352, %v350
      %v354 = vadd.f32 %v353, 0.0
      %v355 = vadd.f32 %v339, %v340
      %v356 = vadd.f32 %v355, %v341
      %v357 = vadd.f32 %v356, %v342
      %v358 = vadd.f32 %v357, 0.0
      %v359 = vld [vmem:[#allocation7] sm:$0xff]
      %v360 = vadd.f32 %v359, %v346
      %361 = vst [vmem:[#allocation7] sm:$0xff] %v360
      %s362 = scalar_lea.vmem [#allocation7], 8
      %v363 = vld [vmem:[%s362] sm:$0xff]
      %v364 = vadd.f32 %v363, %v354
      %365 = vst [vmem:[%s362] sm:$0xff] %v364
      %s366 = scalar_lea.vmem [#allocation7], 16
      %v367 = vld [vmem:[%s366] sm:$0xff]
      %v368 = vadd.f32 %v367, %v358
      %369 = vst [vmem:[%s366] sm:$0xff] %v368
    $region29: #{tpu_custom_call.1} parent=1 // pred_fallthru
      _
    // Predicated region
    $region30: #{tpu_custom_call.1} parent=1 // pred_check
      _
    $region31: #{tpu_custom_call.1} parent=1 // pred_check_branch
      %371 = sbr.rel (0) target = $region33
    $region32: #{tpu_custom_call.1} parent=1 // pred_region
      %s373 = ssub.s32 384, 384
      %374 = vsyncadd [#allocation4], %s373
      %s375 = sshll.u32 [#allocation7], 4
      %s376 = int_to_ptr.vmem [resolvable:$true] %s375
      %381 = dma.vmem_to_hbm [thread:$0]  %s376, 384, %s2, [#allocation4], 128, 128, 8
    $region33: #{tpu_custom_call.1} parent=1 // pred_fallthru
      _
    // Predicated region
    $region34: #{tpu_custom_call.1} parent=1 // pred_check
      _
    $region35: #{tpu_custom_call.1} parent=1 // pred_check_branch
      %383 = sbr.rel (0) target = $region37
    $region36: #{tpu_custom_call.1} parent=1 // pred_region
      %384 = dma.done [#allocation4], 384
    $region37: #{tpu_custom_call.1} parent=1 // pred_fallthru
      _
    %385 = vsyncpa [#allocation3], 1
    %386 = vsyncpa [#allocation6], 1
    %387 = vsyncpa [#allocation4], 1

</llo_original>
